<compile_context>
chip_gen: v6e
topology: v6e:2x2x1
jax: 0.10.0
libtpu: 0.0.40
codegen_flags: <defaults>
</compile_context>

<pallas_src>
import jax
import jax.numpy as jnp
from jax import lax
from jax.experimental import pallas as pl
from jax.experimental.pallas import tpu as pltpu


def _round_up(x: int, m: int) -> int:
    return ((x + m - 1) // m) * m


def _vmem_capacity_bytes() -> int:
    try:
        cap = getattr(pltpu.get_tpu_info(), "vmem_capacity_bytes", None)
        if cap:
            return int(cap)
    except Exception:
        pass
    return 128 * 1024 * 1024  # v5e/v6e default


def _choose_tiles(T, Hp, isz, wsz, out_isz, vmem_cap):
    """Pick (block_t, block_h, sublane_pack, scoped_vmem_cap)."""
    small_vmem = vmem_cap <= 96 * 1024 * 1024             # v7x: 64 MiB per TC
    cap = int(vmem_cap * 0.85) if small_vmem else vmem_cap - (16 << 20)
    budget = int(cap / 1.25)                               # leave 25% margin
    pack = {1: 32, 2: 16}.get(isz, 8)                      # native sublane pack
    t_cap = 512 if small_vmem else 1024

    def fixed_bytes(bh):
        # W^T tile (single-buffered) + output tile (2x, 8-sublane padded)
        # + 3 f32 scratch accumulators (8-sublane padded).
        return Hp * bh * wsz + 2 * 8 * bh * out_isz + 3 * 8 * bh * 4

    # block_h: widest divisor of Hp that fits -> nh == 1 on v5e/v6e so the
    # full-width x tile is streamed exactly once; capped at 512 on v7x.
    h_candidates = [Hp] + [c for c in (2048, 1024, 512, 384, 256, 128)
                           if c < Hp and Hp % c == 0]
    if small_vmem:
        h_candidates = [c for c in h_candidates if c <= 512] or [128]
    block_h = h_candidates[-1]
    for bh in h_candidates:
        if fixed_bytes(bh) + 2 * pack * Hp * isz <= budget:
            block_h = bh
            break

    def fits(bt):
        return 2 * bt * Hp * isz + fixed_bytes(block_h) <= budget

    # block_t: prefer a divisor of T (no time pad, no per-step -inf mask).
    block_t = None
    if T % pack == 0:
        bt, lim = pack, min(T, t_cap)
        while bt <= lim:
            if T % bt == 0 and fits(bt):
                block_t = bt
            bt += pack
    if block_t is None:
        bt = min(_round_up(T, pack), t_cap)
        while bt > pack and not fits(bt):
            bt = _round_up(bt // 2, pack)
        block_t = bt
    return block_t, block_h, pack, cap


def _make_sap_kernel(block_t, block_h, nh, t_actual, needs_mask):
    def kernel(x_ref, wt_ref, o_ref, m_ref, num_ref, den_ref):
        t = pl.program_id(1)

        @pl.when(t == 0)
        def _init():
            m_ref[...] = jnp.full_like(m_ref, -jnp.inf)
            num_ref[...] = jnp.zeros_like(num_ref)
            den_ref[...] = jnp.zeros_like(den_ref)

        x_full = x_ref[...]                                   # (block_t, Hp)
        # Linear on the MXU (bias dropped: softmax over time is shift-invariant
        # per feature column, so it cannot change the output).
        logits = jnp.dot(x_full, wt_ref[...],
                         preferred_element_type=jnp.float32)  # (block_t, block_h)

        if needs_mask:
            # Only compiled in when T % block_t != 0: padded time rows -> -inf.
            row = t * block_t + lax.broadcasted_iota(jnp.int32, logits.shape, 0)
            logits = jnp.where(row < t_actual, logits, -jnp.inf)

        if nh == 1:
            x_h = x_full                                      # (block_t, block_h)
        else:
            # Lane-aligned slice of the already-resident x tile (no extra DMA).
            h0 = pl.multiple_of(pl.program_id(0) * block_h, block_h)
            x_h = x_ref[:, pl.ds(h0, block_h)]

        # Flash-style running softmax over time, independently per feature.
        m_prev = m_ref[...]
        m_new = jnp.maximum(m_prev, jnp.max(logits, axis=0, keepdims=True))
        alpha = jnp.exp(m_prev - m_new)                       # (1, block_h)
        e = jnp.exp(logits - m_new)                           # (block_t, block_h)

        den_ref[...] = alpha * den_ref[...] + jnp.sum(e, axis=0, keepdims=True)
        num_ref[...] = alpha * num_ref[...] + jnp.sum(
            x_h.astype(jnp.float32) * e, axis=0, keepdims=True)
        m_ref[...] = m_new

        @pl.when(t == pl.num_programs(1) - 1)
        def _finalize():
            o_ref[...] = (num_ref[...] *
                          pl.reciprocal(den_ref[...], approx=True)
                          ).astype(o_ref.dtype)

    return kernel


def self_attention_pooling(x, W, b=None, *, block_t=None, block_h=None):
    """x: (T, H); W: (H, H) PyTorch-Linear layout (out, in); b is accepted but
    unused (softmax over the time axis is invariant to a per-column bias).
    Returns (1, H), matching the module's utter_rep.view(1, out_dim)."""
    del b
    T, H = x.shape
    assert W.shape == (H, H), "module only type-checks for out_dim == H"

    Wt = W.T                                  # one-time; folds under jit
    Hp = _round_up(H, 128)                    # lane-dense feature axis
    isz = jnp.dtype(x.dtype).itemsize
    wsz = jnp.dtype(W.dtype).itemsize

    vmem_cap = _vmem_capacity_bytes()
    auto_bt, auto_bh, pack, cap = _choose_tiles(T, Hp, isz, wsz, isz, vmem_cap)
    if block_h is None:
        block_h = auto_bh
    if block_t is None:
        block_t = auto_bt
    assert Hp % block_h == 0 and block_h % 128 == 0
    block_t = max(pack, _round_up(block_t, pack))

    Tp = _round_up(T, block_t)
    needs_mask = Tp != T

    # Only materialize padded copies when actually needed.
    xp = x if (Tp == T and Hp == H) else jnp.pad(x, ((0, Tp - T), (0, Hp - H)))
    wtp = Wt if Hp == H else jnp.pad(Wt, ((0, Hp - H), (0, Hp - H)))

    nh = Hp // block_h
    nt = Tp // block_t
    kernel = _make_sap_kernel(block_t, block_h, nh, T, needs_mask)

    # Accurate VMEM budget (+25% margin), capped per generation.
    vmem_needed = (
        2 * block_t * Hp * isz            # x tile, double-buffered
        + Hp * block_h * wsz              # W^T tile, single-buffered
        + 2 * 8 * block_h * isz           # output tile (8-sublane padded), 2x
        + 3 * 8 * block_h * 4             # f32 scratch accumulators (padded)
    )
    vmem_limit = int(min(max(int(vmem_needed * 1.25), 32 * 1024 * 1024), cap))

    def run(wt_pipeline_mode):
        wt_kwargs = ({} if wt_pipeline_mode is None
                     else {"pipeline_mode": wt_pipeline_mode})
        grid_spec = pltpu.PrefetchScalarGridSpec(
            num_scalar_prefetch=0,
            grid=(nh, nt),                                    # reduction last
            in_specs=[
                pl.BlockSpec((block_t, Hp), lambda h, t: (t, 0)),      # x
                pl.BlockSpec((Hp, block_h), lambda h, t: (0, h),       # W^T
                             **wt_kwargs),
            ],
            out_specs=pl.BlockSpec((1, block_h), lambda h, t: (0, h)),
            scratch_shapes=[pltpu.VMEM((1, block_h), jnp.float32)] * 3,
        )
        return pl.pallas_call(
            kernel,
            out_shape=jax.ShapeDtypeStruct((1, Hp), x.dtype),
            grid_spec=grid_spec,
            compiler_params=pltpu.CompilerParams(
                dimension_semantics=("parallel", "arbitrary"),
                vmem_limit_bytes=vmem_limit,
            ),
        )(xp, wtp)

    try:
        # W^T only changes with the outer h index -> single buffer is enough.
        out = run(pl.Buffered(1))
    except Exception:
        out = run(None)   # fall back if single-buffering is unsupported here

    return out if Hp == H else out[:, :H]


def reference(x, W, b):
    logits = x @ W.T + b[None, :]
    att = jax.nn.softmax(logits, axis=0)
    return jnp.sum(x * att, axis=0).reshape(1, -1)


def _check(key, T, H, dtype, tol, **kw):
    kx, kw_, kb = jax.random.split(key, 3)
    bound = 1.0 / float(H) ** 0.5
    x = jax.random.normal(kx, (T, H), dtype=jnp.float32).astype(dtype)
    W = jax.random.uniform(kw_, (H, H), minval=-bound, maxval=bound).astype(dtype)
    b = jax.random.uniform(kb, (H,), minval=-bound, maxval=bound).astype(dtype)

    out = jax.block_until_ready(self_attention_pooling(x, W, b, **kw))
    ref = reference(x.astype(jnp.float32), W.astype(jnp.float32),
                    b.astype(jnp.float32))
    assert out.shape == (1, H), out.shape
    err = float(jnp.max(jnp.abs(out.astype(jnp.float32) - ref)))
    assert jnp.allclose(out.astype(jnp.float32), ref, atol=tol, rtol=tol), err


if __name__ == "__main__":
    key = jax.random.PRNGKey(0)
    k0, k1, k2, k3 = jax.random.split(key, 4)

    # Shapes implied by the module's forward: 2-D (T, H) with out_dim == H.
    _check(k0, 8, 32, jnp.float32, 2e-3)                    # tiny; nh == nt == 1
    _check(k1, 12, 64, jnp.float32, 2e-3)                   # padded time tail (mask path)
    _check(k2, 24, 256, jnp.float32, 2e-3,
           block_h=128, block_t=8)                          # nh > 1 (in-kernel h slice)
    _check(k3, 16, 128, jnp.bfloat16, 5e-2)                 # bf16 MXU path

    print("KERNEL_OK")
</pallas_src>

<mosaic_0001>
module attributes {stable_mosaic.version = 11 : i64} {
  func.func @kernel(%arg0: i32, %arg1: i32, %arg2: memref<8x128xf32, #tpu.memory_space<vmem>>, %arg3: memref<128x128xf32, #tpu.memory_space<vmem>>, %arg4: memref<1x128xf32, #tpu.memory_space<vmem>>, %arg5: memref<1x128xf32, #tpu.memory_space<vmem>>, %arg6: memref<1x128xf32, #tpu.memory_space<vmem>>, %arg7: memref<1x128xf32, #tpu.memory_space<vmem>>) attributes {dimension_semantics = [#tpu.dimension_semantics<parallel>, #tpu.dimension_semantics<arbitrary>], iteration_bounds = array<i64: 1, 1>, scalar_prefetch = 0 : i64, scratch_operands = 3 : i64, tpu.core_type = #tpu.core_type<tc>, window_params = [{transform_indices = @transform_0, window_bounds = array<i64: 8, 128>}, {pipeline_mode = #tpu.pipeline_mode<synchronous>, transform_indices = @transform_1, window_bounds = array<i64: 128, 128>}, {transform_indices = @transform_2, window_bounds = array<i64: 1, 128>}]} {
    %c0_i32 = arith.constant 0 : i32
    %0 = arith.cmpi eq, %arg1, %c0_i32 : i32
    %1 = arith.extui %0 : i1 to i32
    %c0_i32_0 = arith.constant 0 : i32
    %2 = arith.cmpi ne, %1, %c0_i32_0 : i32
    scf.if %2 {
      %cst_21 = arith.constant 0xFF800000 : f32
      %32 = vector.broadcast %cst_21 : f32 to vector<1x128xf32>
      %c0_22 = arith.constant 0 : index
      %c0_23 = arith.constant 0 : index
      %33 = vector.load %arg5[%c0_22, %c0_23] : memref<1x128xf32, #tpu.memory_space<vmem>>, vector<1x128xf32>
      tpu.vector_store %arg5[%c0_22, %c0_23], %32 {strides = array<i32>} : memref<1x128xf32, #tpu.memory_space<vmem>>, vector<1x128xf32>,
      %cst_24 = arith.constant 0.000000e+00 : f32
      %34 = vector.broadcast %cst_24 : f32 to vector<1x128xf32>
      %c0_25 = arith.constant 0 : index
      %c0_26 = arith.constant 0 : index
      %35 = vector.load %arg6[%c0_25, %c0_26] : memref<1x128xf32, #tpu.memory_space<vmem>>, vector<1x128xf32>
      tpu.vector_store %arg6[%c0_25, %c0_26], %34 {strides = array<i32>} : memref<1x128xf32, #tpu.memory_space<vmem>>, vector<1x128xf32>,
      %cst_27 = arith.constant 0.000000e+00 : f32
      %36 = vector.broadcast %cst_27 : f32 to vector<1x128xf32>
      %c0_28 = arith.constant 0 : index
      %c0_29 = arith.constant 0 : index
      %37 = vector.load %arg7[%c0_28, %c0_29] : memref<1x128xf32, #tpu.memory_space<vmem>>, vector<1x128xf32>
      tpu.vector_store %arg7[%c0_28, %c0_29], %36 {strides = array<i32>} : memref<1x128xf32, #tpu.memory_space<vmem>>, vector<1x128xf32>,
    } else {
    }
    %c0 = arith.constant 0 : index
    %c0_1 = arith.constant 0 : index
    %3 = vector.load %arg2[%c0, %c0_1] : memref<8x128xf32, #tpu.memory_space<vmem>>, vector<8x128xf32>
    %c0_2 = arith.constant 0 : index
    %c0_3 = arith.constant 0 : index
    %4 = vector.load %arg3[%c0_2, %c0_3] : memref<128x128xf32, #tpu.memory_space<vmem>>, vector<128x128xf32>
    %cst = arith.constant dense<0.000000e+00> : vector<8x128xf32>
    %5 = tpu.matmul %3, %4, %cst {dimension_numbers = #tpu.dot_dimension_numbers<[1], [0], [0], [1], [0, 0, 1, 1], [], []>} : vector<8x128xf32>, vector<128x128xf32>, vector<8x128xf32> -> vector<8x128xf32>
    %c0_4 = arith.constant 0 : index
    %c0_5 = arith.constant 0 : index
    %6 = vector.load %arg5[%c0_4, %c0_5] : memref<1x128xf32, #tpu.memory_space<vmem>>, vector<1x128xf32>
    %cst_6 = arith.constant dense<0xFF800000> : vector<128xf32>
    %7 = vector.multi_reduction <maximumf>, %5, %cst_6 [0] : vector<8x128xf32> to vector<128xf32>
    %8 = vector.shape_cast %7 : vector<128xf32> to vector<1x128xf32>
    %9 = arith.maximumf %6, %8 : vector<1x128xf32>
    %10 = arith.subf %6, %9 : vector<1x128xf32>
    %11 = math.exp %10 : vector<1x128xf32>
    %12 = vector.broadcast %9 : vector<1x128xf32> to vector<8x128xf32>
    %13 = arith.subf %5, %12 : vector<8x128xf32>
    %14 = math.exp %13 : vector<8x128xf32>
    %c0_7 = arith.constant 0 : index
    %c0_8 = arith.constant 0 : index
    %15 = vector.load %arg7[%c0_7, %c0_8] : memref<1x128xf32, #tpu.memory_space<vmem>>, vector<1x128xf32>
    %16 = arith.mulf %11, %15 : vector<1x128xf32>
    %cst_9 = arith.constant dense<0.000000e+00> : vector<128xf32>
    %17 = vector.multi_reduction <add>, %14, %cst_9 [0] : vector<8x128xf32> to vector<128xf32>
    %18 = vector.shape_cast %17 : vector<128xf32> to vector<1x128xf32>
    %19 = arith.addf %16, %18 : vector<1x128xf32>
    %c0_10 = arith.constant 0 : index
    %c0_11 = arith.constant 0 : index
    %20 = vector.load %arg7[%c0_10, %c0_11] : memref<1x128xf32, #tpu.memory_space<vmem>>, vector<1x128xf32>
    tpu.vector_store %arg7[%c0_10, %c0_11], %19 {strides = array<i32>} : memref<1x128xf32, #tpu.memory_space<vmem>>, vector<1x128xf32>,
    %c0_12 = arith.constant 0 : index
    %c0_13 = arith.constant 0 : index
    %21 = vector.load %arg6[%c0_12, %c0_13] : memref<1x128xf32, #tpu.memory_space<vmem>>, vector<1x128xf32>
    %22 = arith.mulf %11, %21 : vector<1x128xf32>
    %23 = arith.mulf %3, %14 : vector<8x128xf32>
    %cst_14 = arith.constant dense<0.000000e+00> : vector<128xf32>
    %24 = vector.multi_reduction <add>, %23, %cst_14 [0] : vector<8x128xf32> to vector<128xf32>
    %25 = vector.shape_cast %24 : vector<128xf32> to vector<1x128xf32>
    %26 = arith.addf %22, %25 : vector<1x128xf32>
    %c0_15 = arith.constant 0 : index
    %c0_16 = arith.constant 0 : index
    %27 = vector.load %arg6[%c0_15, %c0_16] : memref<1x128xf32, #tpu.memory_space<vmem>>, vector<1x128xf32>
    tpu.vector_store %arg6[%c0_15, %c0_16], %26 {strides = array<i32>} : memref<1x128xf32, #tpu.memory_space<vmem>>, vector<1x128xf32>,
    %c0_17 = arith.constant 0 : index
    %c0_18 = arith.constant 0 : index
    %28 = vector.load %arg5[%c0_17, %c0_18] : memref<1x128xf32, #tpu.memory_space<vmem>>, vector<1x128xf32>
    tpu.vector_store %arg5[%c0_17, %c0_18], %9 {strides = array<i32>} : memref<1x128xf32, #tpu.memory_space<vmem>>, vector<1x128xf32>,
    %c0_i32_19 = arith.constant 0 : i32
    %29 = arith.cmpi eq, %arg1, %c0_i32_19 : i32
    %30 = arith.extui %29 : i1 to i32
    %c0_i32_20 = arith.constant 0 : i32
    %31 = arith.cmpi ne, %30, %c0_i32_20 : i32
    scf.if %31 {
      %c0_21 = arith.constant 0 : index
      %c0_22 = arith.constant 0 : index
      %32 = vector.load %arg6[%c0_21, %c0_22] : memref<1x128xf32, #tpu.memory_space<vmem>>, vector<1x128xf32>
      %c0_23 = arith.constant 0 : index
      %c0_24 = arith.constant 0 : index
      %33 = vector.load %arg7[%c0_23, %c0_24] : memref<1x128xf32, #tpu.memory_space<vmem>>, vector<1x128xf32>
      %34 = tpu.reciprocal %33 {approx = true} : vector<1x128xf32> -> vector<1x128xf32>
      %35 = arith.mulf %32, %34 : vector<1x128xf32>
      %c0_25 = arith.constant 0 : index
      %c0_26 = arith.constant 0 : index
      %36 = vector.load %arg4[%c0_25, %c0_26] : memref<1x128xf32, #tpu.memory_space<vmem>>, vector<1x128xf32>
      tpu.vector_store %arg4[%c0_25, %c0_26], %35 {strides = array<i32>} : memref<1x128xf32, #tpu.memory_space<vmem>>, vector<1x128xf32>,
    } else {
    }
    return
  }
  func.func @transform_0(%arg0: i32, %arg1: i32) -> (i32, i32) {
    %c0_i32 = arith.constant 0 : i32
    %c0_i32_0 = arith.constant 0 : i32
    return %arg1, %c0_i32 : i32, i32
  }
  func.func @transform_1(%arg0: i32, %arg1: i32) -> (i32, i32) {
    %c0_i32 = arith.constant 0 : i32
    %c0_i32_0 = arith.constant 0 : i32
    return %c0_i32, %arg0 : i32, i32
  }
  func.func @transform_2(%arg0: i32, %arg1: i32) -> (i32, i32) {
    %c0_i32 = arith.constant 0 : i32
    %c0_i32_0 = arith.constant 0 : i32
    return %c0_i32, %arg0 : i32, i32
  }
}

module attributes {stable_mosaic.version = 11 : i64} {
  func.func @kernel(%arg0: i32, %arg1: i32, %arg2: memref<8x128xf32, #tpu.memory_space<vmem>>, %arg3: memref<128x128xf32, #tpu.memory_space<vmem>>, %arg4: memref<1x128xf32, #tpu.memory_space<vmem>>, %arg5: memref<1x128xf32, #tpu.memory_space<vmem>>, %arg6: memref<1x128xf32, #tpu.memory_space<vmem>>, %arg7: memref<1x128xf32, #tpu.memory_space<vmem>>) attributes {dimension_semantics = [#tpu.dimension_semantics<parallel>, #tpu.dimension_semantics<arbitrary>], iteration_bounds = array<i64: 1, 1>, scalar_prefetch = 0 : i64, scratch_operands = 3 : i64, tpu.core_type = #tpu.core_type<tc>, window_params = [{transform_indices = @transform_0, window_bounds = array<i64: 8, 128>}, {transform_indices = @transform_1, window_bounds = array<i64: 128, 128>}, {transform_indices = @transform_2, window_bounds = array<i64: 1, 128>}]} {
    %c0_i32 = arith.constant 0 : i32
    %0 = arith.cmpi eq, %arg1, %c0_i32 : i32
    %1 = arith.extui %0 : i1 to i32
    %c0_i32_0 = arith.constant 0 : i32
    %2 = arith.cmpi ne, %1, %c0_i32_0 : i32
    scf.if %2 {
      %cst_21 = arith.constant 0xFF800000 : f32
      %32 = vector.broadcast %cst_21 : f32 to vector<1x128xf32>
      %c0_22 = arith.constant 0 : index
      %c0_23 = arith.constant 0 : index
      %33 = vector.load %arg5[%c0_22, %c0_23] : memref<1x128xf32, #tpu.memory_space<vmem>>, vector<1x128xf32>
      tpu.vector_store %arg5[%c0_22, %c0_23], %32 {strides = array<i32>} : memref<1x128xf32, #tpu.memory_space<vmem>>, vector<1x128xf32>,
      %cst_24 = arith.constant 0.000000e+00 : f32
      %34 = vector.broadcast %cst_24 : f32 to vector<1x128xf32>
      %c0_25 = arith.constant 0 : index
      %c0_26 = arith.constant 0 : index
      %35 = vector.load %arg6[%c0_25, %c0_26] : memref<1x128xf32, #tpu.memory_space<vmem>>, vector<1x128xf32>
      tpu.vector_store %arg6[%c0_25, %c0_26], %34 {strides = array<i32>} : memref<1x128xf32, #tpu.memory_space<vmem>>, vector<1x128xf32>,
      %cst_27 = arith.constant 0.000000e+00 : f32
      %36 = vector.broadcast %cst_27 : f32 to vector<1x128xf32>
      %c0_28 = arith.constant 0 : index
      %c0_29 = arith.constant 0 : index
      %37 = vector.load %arg7[%c0_28, %c0_29] : memref<1x128xf32, #tpu.memory_space<vmem>>, vector<1x128xf32>
      tpu.vector_store %arg7[%c0_28, %c0_29], %36 {strides = array<i32>} : memref<1x128xf32, #tpu.memory_space<vmem>>, vector<1x128xf32>,
    } else {
    }
    %c0 = arith.constant 0 : index
    %c0_1 = arith.constant 0 : index
    %3 = vector.load %arg2[%c0, %c0_1] : memref<8x128xf32, #tpu.memory_space<vmem>>, vector<8x128xf32>
    %c0_2 = arith.constant 0 : index
    %c0_3 = arith.constant 0 : index
    %4 = vector.load %arg3[%c0_2, %c0_3] : memref<128x128xf32, #tpu.memory_space<vmem>>, vector<128x128xf32>
    %cst = arith.constant dense<0.000000e+00> : vector<8x128xf32>
    %5 = tpu.matmul %3, %4, %cst {dimension_numbers = #tpu.dot_dimension_numbers<[1], [0], [0], [1], [0, 0, 1, 1], [], []>} : vector<8x128xf32>, vector<128x128xf32>, vector<8x128xf32> -> vector<8x128xf32>
    %c0_4 = arith.constant 0 : index
    %c0_5 = arith.constant 0 : index
    %6 = vector.load %arg5[%c0_4, %c0_5] : memref<1x128xf32, #tpu.memory_space<vmem>>, vector<1x128xf32>
    %cst_6 = arith.constant dense<0xFF800000> : vector<128xf32>
    %7 = vector.multi_reduction <maximumf>, %5, %cst_6 [0] : vector<8x128xf32> to vector<128xf32>
    %8 = vector.shape_cast %7 : vector<128xf32> to vector<1x128xf32>
    %9 = arith.maximumf %6, %8 : vector<1x128xf32>
    %10 = arith.subf %6, %9 : vector<1x128xf32>
    %11 = math.exp %10 : vector<1x128xf32>
    %12 = vector.broadcast %9 : vector<1x128xf32> to vector<8x128xf32>
    %13 = arith.subf %5, %12 : vector<8x128xf32>
    %14 = math.exp %13 : vector<8x128xf32>
    %c0_7 = arith.constant 0 : index
    %c0_8 = arith.constant 0 : index
    %15 = vector.load %arg7[%c0_7, %c0_8] : memref<1x128xf32, #tpu.memory_space<vmem>>, vector<1x128xf32>
    %16 = arith.mulf %11, %15 : vector<1x128xf32>
    %cst_9 = arith.constant dense<0.000000e+00> : vector<128xf32>
    %17 = vector.multi_reduction <add>, %14, %cst_9 [0] : vector<8x128xf32> to vector<128xf32>
    %18 = vector.shape_cast %17 : vector<128xf32> to vector<1x128xf32>
    %19 = arith.addf %16, %18 : vector<1x128xf32>
    %c0_10 = arith.constant 0 : index
    %c0_11 = arith.constant 0 : index
    %20 = vector.load %arg7[%c0_10, %c0_11] : memref<1x128xf32, #tpu.memory_space<vmem>>, vector<1x128xf32>
    tpu.vector_store %arg7[%c0_10, %c0_11], %19 {strides = array<i32>} : memref<1x128xf32, #tpu.memory_space<vmem>>, vector<1x128xf32>,
    %c0_12 = arith.constant 0 : index
    %c0_13 = arith.constant 0 : index
    %21 = vector.load %arg6[%c0_12, %c0_13] : memref<1x128xf32, #tpu.memory_space<vmem>>, vector<1x128xf32>
    %22 = arith.mulf %11, %21 : vector<1x128xf32>
    %23 = arith.mulf %3, %14 : vector<8x128xf32>
    %cst_14 = arith.constant dense<0.000000e+00> : vector<128xf32>
    %24 = vector.multi_reduction <add>, %23, %cst_14 [0] : vector<8x128xf32> to vector<128xf32>
    %25 = vector.shape_cast %24 : vector<128xf32> to vector<1x128xf32>
    %26 = arith.addf %22, %25 : vector<1x128xf32>
    %c0_15 = arith.constant 0 : index
    %c0_16 = arith.constant 0 : index
    %27 = vector.load %arg6[%c0_15, %c0_16] : memref<1x128xf32, #tpu.memory_space<vmem>>, vector<1x128xf32>
    tpu.vector_store %arg6[%c0_15, %c0_16], %26 {strides = array<i32>} : memref<1x128xf32, #tpu.memory_space<vmem>>, vector<1x128xf32>,
    %c0_17 = arith.constant 0 : index
    %c0_18 = arith.constant 0 : index
    %28 = vector.load %arg5[%c0_17, %c0_18] : memref<1x128xf32, #tpu.memory_space<vmem>>, vector<1x128xf32>
    tpu.vector_store %arg5[%c0_17, %c0_18], %9 {strides = array<i32>} : memref<1x128xf32, #tpu.memory_space<vmem>>, vector<1x128xf32>,
    %c0_i32_19 = arith.constant 0 : i32
    %29 = arith.cmpi eq, %arg1, %c0_i32_19 : i32
    %30 = arith.extui %29 : i1 to i32
    %c0_i32_20 = arith.constant 0 : i32
    %31 = arith.cmpi ne, %30, %c0_i32_20 : i32
    scf.if %31 {
      %c0_21 = arith.constant 0 : index
      %c0_22 = arith.constant 0 : index
      %32 = vector.load %arg6[%c0_21, %c0_22] : memref<1x128xf32, #tpu.memory_space<vmem>>, vector<1x128xf32>
      %c0_23 = arith.constant 0 : index
      %c0_24 = arith.constant 0 : index
      %33 = vector.load %arg7[%c0_23, %c0_24] : memref<1x128xf32, #tpu.memory_space<vmem>>, vector<1x128xf32>
      %34 = tpu.reciprocal %33 {approx = true} : vector<1x128xf32> -> vector<1x128xf32>
      %35 = arith.mulf %32, %34 : vector<1x128xf32>
      %c0_25 = arith.constant 0 : index
      %c0_26 = arith.constant 0 : index
      %36 = vector.load %arg4[%c0_25, %c0_26] : memref<1x128xf32, #tpu.memory_space<vmem>>, vector<1x128xf32>
      tpu.vector_store %arg4[%c0_25, %c0_26], %35 {strides = array<i32>} : memref<1x128xf32, #tpu.memory_space<vmem>>, vector<1x128xf32>,
    } else {
    }
    return
  }
  func.func @transform_0(%arg0: i32, %arg1: i32) -> (i32, i32) {
    %c0_i32 = arith.constant 0 : i32
    %c0_i32_0 = arith.constant 0 : i32
    return %arg1, %c0_i32 : i32, i32
  }
  func.func @transform_1(%arg0: i32, %arg1: i32) -> (i32, i32) {
    %c0_i32 = arith.constant 0 : i32
    %c0_i32_0 = arith.constant 0 : i32
    return %c0_i32, %arg0 : i32, i32
  }
  func.func @transform_2(%arg0: i32, %arg1: i32) -> (i32, i32) {
    %c0_i32 = arith.constant 0 : i32
    %c0_i32_0 = arith.constant 0 : i32
    return %c0_i32, %arg0 : i32, i32
  }
}

</mosaic_0001>

<llo_original>
// kernel: tpu_custom_call.1
$region0: #{tpu_custom_call.1}
  #allocation0 [shape = 'u32[]', space=smem, size = 0x4, offset = 0x4, fixed_abs, tag = 'smem constant byte address 0x4 - core index']
  #allocation1 [shape = 'u32[144,128]{1,0:T(1,128)}', space=vmem, size = 0x12000, scoped, tag = 'internal scratch']
  #allocation2 [shape = 'f32[1,128]{1,0:T(1,128)}', space=vmem, size = 0x200, scoped, tag = 'scratch operand']
  #allocation3 [shape = 'f32[1,128]{1,0:T(1,128)}', space=vmem, size = 0x200, scoped, tag = 'scratch operand']
  #allocation4 [shape = 'f32[1,128]{1,0:T(1,128)}', space=vmem, size = 0x200, scoped, tag = 'scratch operand']
  %s0 = inlined_call_operand.hbm [shape: f32[8,128], index: 0, kind: input, shape index: {}]
  %s1 = inlined_call_operand.hbm [shape: f32[128,128], index: 1, kind: input, shape index: {}]
  %s2 = inlined_call_operand.hbm [shape: f32[1,128], index: 2, kind: output, shape index: {}]
  %s3 = sld [smem:[#allocation0]]
  $region34: #{tpu_custom_call.1} parent=0
    _
  %s5 = ssub.s32 1, %s3
  %s6 = scalar_select 0, %s5, %s3
  $region1: #{tpu_custom_call.1} parent=0
    #allocation5 [shape = 'u8[4096]{0}', space=vmem, size = 0x1000, scoped, tag = 'input window, operand 0, single buffered']
    #allocation6 [shape = 's32[1]{0}', space=sflag, size = 0x4, scoped, tag = 'scoped memory for tpu_custom_call.1']
    #allocation7 [shape = 's32[1]{0}', space=sflag, size = 0x4, scoped, tag = 'scoped memory for tpu_custom_call.1']
    #allocation8 [shape = 'u8[65536]{0}', space=vmem, size = 0x10000, scoped, tag = 'input window, operand 1, single buffered']
    #allocation9 [shape = 's32[1]{0}', space=sflag, size = 0x4, scoped, tag = 'scoped memory for tpu_custom_call.1']
    #allocation10 [shape = 'u8[512]{0}', space=vmem, size = 0x400, scoped, tag = 'output window, operand 0, single buffered']
    %7 = vsyncpa [#allocation6], 0
    %8 = vsyncpa [#allocation9], 0
    %9 = vsyncpa [#allocation7], 0
    // Predicated region
    $region2: #{tpu_custom_call.1} parent=1 // pred_check
      _
    $region3: #{tpu_custom_call.1} parent=1 // pred_check_branch
      %11 = sbr.rel (0) target = $region5
    $region4: #{tpu_custom_call.1} parent=1 // pred_region
      %s13 = ssub.s32 128, 128
      %14 = vsyncadd [#allocation6], %s13
      %s16 = sshll.u32 [#allocation5], 4
      %s17 = int_to_ptr.vmem [resolvable:$true] %s16
      %19 = dma.hbm_to_vmem [thread:$0]  %s0, 128, %s17, [#allocation6]
    $region5: #{tpu_custom_call.1} parent=1 // pred_fallthru
      _
    // Predicated region
    $region6: #{tpu_custom_call.1} parent=1 // pred_check
      _
    $region7: #{tpu_custom_call.1} parent=1 // pred_check_branch
      %21 = sbr.rel (0) target = $region9
    $region8: #{tpu_custom_call.1} parent=1 // pred_region
      %s23 = ssub.s32 2048, 2048
      %24 = vsyncadd [#allocation9], %s23
      %s25 = sshll.u32 [#allocation8], 4
      %s26 = int_to_ptr.vmem [resolvable:$true] %s25
      %31 = dma.hbm_to_vmem [thread:$0]  %s1, 2048, %s26, [#allocation9], 128, 128, 8
    $region9: #{tpu_custom_call.1} parent=1 // pred_fallthru
      _
    // Predicated region
    $region10: #{tpu_custom_call.1} parent=1 // pred_check
      _
    $region11: #{tpu_custom_call.1} parent=1 // pred_check_branch
      %33 = sbr.rel (0) target = $region13
    $region12: #{tpu_custom_call.1} parent=1 // pred_region
      %34 = dma.done [#allocation6], 128
    $region13: #{tpu_custom_call.1} parent=1 // pred_fallthru
      _
    // Predicated region
    $region14: #{tpu_custom_call.1} parent=1 // pred_check
      _
    $region15: #{tpu_custom_call.1} parent=1 // pred_check_branch
      %36 = sbr.rel (0) target = $region17
    $region16: #{tpu_custom_call.1} parent=1 // pred_region
      %37 = dma.done [#allocation9], 2048
    $region17: #{tpu_custom_call.1} parent=1 // pred_fallthru
      _
    %p38 = scmp.eq.s32.totalorder 0, 0
    // Predicated region
    $region18: #{tpu_custom_call.1} parent=1 // pred_check
      %p39 = pneg %p38
    $region19: #{tpu_custom_call.1} parent=1 // pred_check_branch
      %41 = sbr.rel (%p39) target = $region21
    $region20: #{tpu_custom_call.1} parent=1 // pred_region
      %42 = vst [vmem:[#allocation2] sm:$0x1] -inf
      %43 = vst [vmem:[#allocation3] sm:$0x1] 0.0
      %44 = vst [vmem:[#allocation4] sm:$0x1] 0.0
    $region21: #{tpu_custom_call.1} parent=1 // pred_fallthru
      _
    %v45 = vld [vmem:[#allocation5] sm:$0xff]
    %v46 = vld [vmem:[#allocation8] sm:$0xff]
    %v47 = vld [vmem:[#allocation8 + $0x8] sm:$0xff]
    %v48 = vld [vmem:[#allocation8 + $0x10] sm:$0xff]
    %v49 = vld [vmem:[#allocation8 + $0x18] sm:$0xff]
    %v50 = vld [vmem:[#allocation8 + $0x20] sm:$0xff]
    %v51 = vld [vmem:[#allocation8 + $0x28] sm:$0xff]
    %v52 = vld [vmem:[#allocation8 + $0x30] sm:$0xff]
    %v53 = vld [vmem:[#allocation8 + $0x38] sm:$0xff]
    %v54 = vld [vmem:[#allocation8 + $0x40] sm:$0xff]
    %v55 = vld [vmem:[#allocation8 + $0x48] sm:$0xff]
    %v56 = vld [vmem:[#allocation8 + $0x50] sm:$0xff]
    %v57 = vld [vmem:[#allocation8 + $0x58] sm:$0xff]
    %v58 = vld [vmem:[#allocation8 + $0x60] sm:$0xff]
    %v59 = vld [vmem:[#allocation8 + $0x68] sm:$0xff]
    %v60 = vld [vmem:[#allocation8 + $0x70] sm:$0xff]
    %v61 = vld [vmem:[#allocation8 + $0x78] sm:$0xff]
    %62 = vmatprep.subr.mxu0 0.0
    %63 = vmatpush1.msra.mxu0 %v61
    %64 = vmatprep.subr.mxu0 0.0
    %65 = vmatpush1.msra.mxu0 %v60
    %66 = vmatprep.subr.mxu0 0.0
    %67 = vmatpush1.msra.mxu0 %v59
    %68 = vmatprep.subr.mxu0 0.0
    %69 = vmatpush1.msra.mxu0 %v58
    %70 = vmatprep.subr.mxu0 0.0
    %71 = vmatpush1.msra.mxu0 %v57
    %72 = vmatprep.subr.mxu0 0.0
    %73 = vmatpush1.msra.mxu0 %v56
    %74 = vmatprep.subr.mxu0 0.0
    %75 = vmatpush1.msra.mxu0 %v55
    %76 = vmatprep.subr.mxu0 0.0
    %77 = vmatpush1.msra.mxu0 %v54
    %78 = vmatprep.subr.mxu0 0.0
    %79 = vmatpush1.msra.mxu0 %v53
    %80 = vmatprep.subr.mxu0 0.0
    %81 = vmatpush1.msra.mxu0 %v52
    %82 = vmatprep.subr.mxu0 0.0
    %83 = vmatpush1.msra.mxu0 %v51
    %84 = vmatprep.subr.mxu0 0.0
    %85 = vmatpush1.msra.mxu0 %v50
    %86 = vmatprep.subr.mxu0 0.0
    %87 = vmatpush1.msra.mxu0 %v49
    %88 = vmatprep.subr.mxu0 0.0
    %89 = vmatpush1.msra.mxu0 %v48
    %90 = vmatprep.subr.mxu0 0.0
    %91 = vmatpush1.msra.mxu0 %v47
    %92 = vmatprep.subr.mxu0 0.0
    %93 = vmatpush1.msra.mxu0 %v46
    %94 = vmatprep.subr.mxu0 0.0
    %95 = vmatpush2.msra.mxu0 0.0
    %96 = vmatprep.subr.mxu0 0.0
    %97 = vmatpush2.msra.mxu0 0.0
    %98 = vmatprep.subr.mxu0 0.0
    %99 = vmatpush2.msra.mxu0 0.0
    %100 = vmatprep.subr.mxu0 0.0
    %101 = vmatpush2.msra.mxu0 0.0
    %102 = vmatprep.subr.mxu0 0.0
    %103 = vmatpush2.msra.mxu0 0.0
    %104 = vmatprep.subr.mxu0 0.0
    %105 = vmatpush2.msra.mxu0 0.0
    %106 = vmatprep.subr.mxu0 0.0
    %107 = vmatpush2.msra.mxu0 0.0
    %108 = vmatprep.subr.mxu0 0.0
    %109 = vmatpush2.msra.mxu0 0.0
    %110 = vmatprep.subr.mxu0 0.0
    %111 = vmatpush2.msra.mxu0 0.0
    %112 = vmatprep.subr.mxu0 0.0
    %113 = vmatpush2.msra.mxu0 0.0
    %114 = vmatprep.subr.mxu0 0.0
    %115 = vmatpush2.msra.mxu0 0.0
    %116 = vmatprep.subr.mxu0 0.0
    %117 = vmatpush2.msra.mxu0 0.0
    %118 = vmatprep.subr.mxu0 0.0
    %119 = vmatpush2.msra.mxu0 0.0
    %120 = vmatprep.subr.mxu0 0.0
    %121 = vmatpush2.msra.mxu0 0.0
    %122 = vmatprep.subr.mxu0 0.0
    %123 = vmatpush2.msra.mxu0 0.0
    %124 = vmatprep.subr.mxu0 0.0
    %125 = vmatpush2.msra.mxu0 0.0
    %126 = vmatprep.mubr.f32.mxu0 0.0
    %127 = vmatmul.mubr.f32.gmra.mxu0 %v45
    %v128 = vpop.f32.mrf.mxu0
    %v129 = vadd.f32 0.0, %v128
    %v130 = vpop.f32.mrf.mxu0
    %131 = vdwg.mxu0
    %v132 = vld [vmem:[#allocation2] sm:$0x1]
    %v133 = vrot.slane %v129, 4
    %v134 = vmax.f32 %v129, %v133
    %v135 = vrot.slane %v134, 2
    %v136 = vmax.f32 %v134, %v135
    %v137 = vrot.slane %v136, 1
    %v138 = vmax.f32 %v136, %v137
    %v139 = vmax.f32 %v132, %v138
    %v140 = vsub.f32 %v132, %v139
    %v141 = vmul.f32 %v140, 1.442695
    %v142 = vpow.pop %v141
    %v144 = vlaneseq
    %v145 = vshrl.u32 %v144, 7
    %v146 = vsub.s32 0, %v145
    %v147 = vrot.slane %v139, %v146
    %v149 = vsub.f32 %v129, %v147
    %v150 = vmul.f32 %v149, 1.442695
    %v151 = vpow.pop %v150
    %v152 = vld [vmem:[#allocation4] sm:$0x1]
    %v153 = vmul.f32 %v142, %v152
    %v154 = vrot.slane %v151, 4
    %v155 = vadd.f32 %v151, %v154
    %v156 = vrot.slane %v155, 2
    %v157 = vadd.f32 %v155, %v156
    %v158 = vrot.slane %v157, 1
    %v159 = vadd.f32 %v157, %v158
    %v160 = vadd.f32 %v153, %v159
    %161 = vst [vmem:[#allocation4] sm:$0x1] %v160
    %v162 = vld [vmem:[#allocation3] sm:$0x1]
    %v163 = vmul.f32 %v142, %v162
    %v164 = vmul.f32 %v45, %v151
    %v165 = vrot.slane %v164, 4
    %v166 = vadd.f32 %v164, %v165
    %v167 = vrot.slane %v166, 2
    %v168 = vadd.f32 %v166, %v167
    %v169 = vrot.slane %v168, 1
    %v170 = vadd.f32 %v168, %v169
    %v171 = vadd.f32 %v163, %v170
    %172 = vst [vmem:[#allocation3] sm:$0x1] %v171
    %173 = vst [vmem:[#allocation2] sm:$0x1] %v139
    // Predicated region
    $region22: #{tpu_custom_call.1} parent=1 // pred_check
      %p174 = pneg %p38
    $region23: #{tpu_custom_call.1} parent=1 // pred_check_branch
      %176 = sbr.rel (%p174) target = $region25
    $region24: #{tpu_custom_call.1} parent=1 // pred_region
      %v177 = vld [vmem:[#allocation3] sm:$0x1]
      %v178 = vld [vmem:[#allocation4] sm:$0x1]
      %v179 = vrcp.pop %v178
      %v180 = vmul.f32 %v177, %v179
      %181 = vst [vmem:[#allocation10] sm:$0x1] %v180
    $region25: #{tpu_custom_call.1} parent=1 // pred_fallthru
      _
    // Predicated region
    $region26: #{tpu_custom_call.1} parent=1 // pred_check
      _
    $region27: #{tpu_custom_call.1} parent=1 // pred_check_branch
      %183 = sbr.rel (0) target = $region29
    $region28: #{tpu_custom_call.1} parent=1 // pred_region
      %s185 = ssub.s32 16, 16
      %186 = vsyncadd [#allocation7], %s185
      %s188 = sshll.u32 [#allocation10], 4
      %s189 = int_to_ptr.vmem [resolvable:$true] %s188
      %191 = dma.vmem_to_hbm [thread:$0]  %s189, 16, %s2, [#allocation7]
    $region29: #{tpu_custom_call.1} parent=1 // pred_fallthru
      _
    // Predicated region
    $region30: #{tpu_custom_call.1} parent=1 // pred_check
      _
    $region31: #{tpu_custom_call.1} parent=1 // pred_check_branch
      %193 = sbr.rel (0) target = $region33
    $region32: #{tpu_custom_call.1} parent=1 // pred_region
      %194 = dma.done [#allocation7], 16
    $region33: #{tpu_custom_call.1} parent=1 // pred_fallthru
      _
    %195 = vsyncpa [#allocation6], 1
    %196 = vsyncpa [#allocation9], 1
    %197 = vsyncpa [#allocation7], 1

// kernel: tpu_custom_call.1
$region0: #{tpu_custom_call.1}
  #allocation0 [shape = 'u32[]', space=smem, size = 0x4, offset = 0x4, fixed_abs, tag = 'smem constant byte address 0x4 - core index']
  #allocation1 [shape = 'u32[144,128]{1,0:T(1,128)}', space=vmem, size = 0x12000, scoped, tag = 'internal scratch']
  #allocation2 [shape = 'f32[1,128]{1,0:T(1,128)}', space=vmem, size = 0x200, scoped, tag = 'scratch operand']
  #allocation3 [shape = 'f32[1,128]{1,0:T(1,128)}', space=vmem, size = 0x200, scoped, tag = 'scratch operand']
  #allocation4 [shape = 'f32[1,128]{1,0:T(1,128)}', space=vmem, size = 0x200, scoped, tag = 'scratch operand']
  %s0 = inlined_call_operand.hbm [shape: f32[8,128], index: 0, kind: input, shape index: {}]
  %s1 = inlined_call_operand.hbm [shape: f32[128,128], index: 1, kind: input, shape index: {}]
  %s2 = inlined_call_operand.hbm [shape: f32[1,128], index: 2, kind: output, shape index: {}]
  %s3 = sld [smem:[#allocation0]]
  $region34: #{tpu_custom_call.1} parent=0
    _
  %s5 = ssub.s32 1, %s3
  %s6 = scalar_select 0, %s5, %s3
  $region1: #{tpu_custom_call.1} parent=0
    #allocation5 [shape = 'u8[4096]{0}', space=vmem, size = 0x1000, scoped, tag = 'input window, operand 0, single buffered']
    #allocation6 [shape = 's32[1]{0}', space=sflag, size = 0x4, scoped, tag = 'scoped memory for tpu_custom_call.1']
    #allocation7 [shape = 's32[1]{0}', space=sflag, size = 0x4, scoped, tag = 'scoped memory for tpu_custom_call.1']
    #allocation8 [shape = 'u8[65536]{0}', space=vmem, size = 0x10000, scoped, tag = 'input window, operand 1, single buffered']
    #allocation9 [shape = 's32[1]{0}', space=sflag, size = 0x4, scoped, tag = 'scoped memory for tpu_custom_call.1']
    #allocation10 [shape = 'u8[512]{0}', space=vmem, size = 0x400, scoped, tag = 'output window, operand 0, single buffered']
    %7 = vsyncpa [#allocation6], 0
    %8 = vsyncpa [#allocation9], 0
    %9 = vsyncpa [#allocation7], 0
    // Predicated region
    $region2: #{tpu_custom_call.1} parent=1 // pred_check
      _
    $region3: #{tpu_custom_call.1} parent=1 // pred_check_branch
      %11 = sbr.rel (0) target = $region5
    $region4: #{tpu_custom_call.1} parent=1 // pred_region
      %s13 = ssub.s32 128, 128
      %14 = vsyncadd [#allocation6], %s13
      %s16 = sshll.u32 [#allocation5], 4
      %s17 = int_to_ptr.vmem [resolvable:$true] %s16
      %19 = dma.hbm_to_vmem [thread:$0]  %s0, 128, %s17, [#allocation6]
    $region5: #{tpu_custom_call.1} parent=1 // pred_fallthru
      _
    // Predicated region
    $region6: #{tpu_custom_call.1} parent=1 // pred_check
      _
    $region7: #{tpu_custom_call.1} parent=1 // pred_check_branch
      %21 = sbr.rel (0) target = $region9
    $region8: #{tpu_custom_call.1} parent=1 // pred_region
      %s23 = ssub.s32 2048, 2048
      %24 = vsyncadd [#allocation9], %s23
      %s25 = sshll.u32 [#allocation8], 4
      %s26 = int_to_ptr.vmem [resolvable:$true] %s25
      %31 = dma.hbm_to_vmem [thread:$0]  %s1, 2048, %s26, [#allocation9], 128, 128, 8
    $region9: #{tpu_custom_call.1} parent=1 // pred_fallthru
      _
    // Predicated region
    $region10: #{tpu_custom_call.1} parent=1 // pred_check
      _
    $region11: #{tpu_custom_call.1} parent=1 // pred_check_branch
      %33 = sbr.rel (0) target = $region13
    $region12: #{tpu_custom_call.1} parent=1 // pred_region
      %34 = dma.done [#allocation6], 128
    $region13: #{tpu_custom_call.1} parent=1 // pred_fallthru
      _
    // Predicated region
    $region14: #{tpu_custom_call.1} parent=1 // pred_check
      _
    $region15: #{tpu_custom_call.1} parent=1 // pred_check_branch
      %36 = sbr.rel (0) target = $region17
    $region16: #{tpu_custom_call.1} parent=1 // pred_region
      %37 = dma.done [#allocation9], 2048
    $region17: #{tpu_custom_call.1} parent=1 // pred_fallthru
      _
    %p38 = scmp.eq.s32.totalorder 0, 0
    // Predicated region
    $region18: #{tpu_custom_call.1} parent=1 // pred_check
      %p39 = pneg %p38
    $region19: #{tpu_custom_call.1} parent=1 // pred_check_branch
      %41 = sbr.rel (%p39) target = $region21
    $region20: #{tpu_custom_call.1} parent=1 // pred_region
      %42 = vst [vmem:[#allocation2] sm:$0x1] -inf
      %43 = vst [vmem:[#allocation3] sm:$0x1] 0.0
      %44 = vst [vmem:[#allocation4] sm:$0x1] 0.0
    $region21: #{tpu_custom_call.1} parent=1 // pred_fallthru
      _
    %v45 = vld [vmem:[#allocation5] sm:$0xff]
    %v46 = vld [vmem:[#allocation8] sm:$0xff]
    %v47 = vld [vmem:[#allocation8 + $0x8] sm:$0xff]
    %v48 = vld [vmem:[#allocation8 + $0x10] sm:$0xff]
    %v49 = vld [vmem:[#allocation8 + $0x18] sm:$0xff]
    %v50 = vld [vmem:[#allocation8 + $0x20] sm:$0xff]
    %v51 = vld [vmem:[#allocation8 + $0x28] sm:$0xff]
    %v52 = vld [vmem:[#allocation8 + $0x30] sm:$0xff]
    %v53 = vld [vmem:[#allocation8 + $0x38] sm:$0xff]
    %v54 = vld [vmem:[#allocation8 + $0x40] sm:$0xff]
    %v55 = vld [vmem:[#allocation8 + $0x48] sm:$0xff]
    %v56 = vld [vmem:[#allocation8 + $0x50] sm:$0xff]
    %v57 = vld [vmem:[#allocation8 + $0x58] sm:$0xff]
    %v58 = vld [vmem:[#allocation8 + $0x60] sm:$0xff]
    %v59 = vld [vmem:[#allocation8 + $0x68] sm:$0xff]
    %v60 = vld [vmem:[#allocation8 + $0x70] sm:$0xff]
    %v61 = vld [vmem:[#allocation8 + $0x78] sm:$0xff]
    %62 = vmatprep.subr.mxu0 0.0
    %63 = vmatpush1.msra.mxu0 %v61
    %64 = vmatprep.subr.mxu0 0.0
    %65 = vmatpush1.msra.mxu0 %v60
    %66 = vmatprep.subr.mxu0 0.0
    %67 = vmatpush1.msra.mxu0 %v59
    %68 = vmatprep.subr.mxu0 0.0
    %69 = vmatpush1.msra.mxu0 %v58
    %70 = vmatprep.subr.mxu0 0.0
    %71 = vmatpush1.msra.mxu0 %v57
    %72 = vmatprep.subr.mxu0 0.0
    %73 = vmatpush1.msra.mxu0 %v56
    %74 = vmatprep.subr.mxu0 0.0
    %75 = vmatpush1.msra.mxu0 %v55
    %76 = vmatprep.subr.mxu0 0.0
    %77 = vmatpush1.msra.mxu0 %v54
    %78 = vmatprep.subr.mxu0 0.0
    %79 = vmatpush1.msra.mxu0 %v53
    %80 = vmatprep.subr.mxu0 0.0
    %81 = vmatpush1.msra.mxu0 %v52
    %82 = vmatprep.subr.mxu0 0.0
    %83 = vmatpush1.msra.mxu0 %v51
    %84 = vmatprep.subr.mxu0 0.0
    %85 = vmatpush1.msra.mxu0 %v50
    %86 = vmatprep.subr.mxu0 0.0
    %87 = vmatpush1.msra.mxu0 %v49
    %88 = vmatprep.subr.mxu0 0.0
    %89 = vmatpush1.msra.mxu0 %v48
    %90 = vmatprep.subr.mxu0 0.0
    %91 = vmatpush1.msra.mxu0 %v47
    %92 = vmatprep.subr.mxu0 0.0
    %93 = vmatpush1.msra.mxu0 %v46
    %94 = vmatprep.subr.mxu0 0.0
    %95 = vmatpush2.msra.mxu0 0.0
    %96 = vmatprep.subr.mxu0 0.0
    %97 = vmatpush2.msra.mxu0 0.0
    %98 = vmatprep.subr.mxu0 0.0
    %99 = vmatpush2.msra.mxu0 0.0
    %100 = vmatprep.subr.mxu0 0.0
    %101 = vmatpush2.msra.mxu0 0.0
    %102 = vmatprep.subr.mxu0 0.0
    %103 = vmatpush2.msra.mxu0 0.0
    %104 = vmatprep.subr.mxu0 0.0
    %105 = vmatpush2.msra.mxu0 0.0
    %106 = vmatprep.subr.mxu0 0.0
    %107 = vmatpush2.msra.mxu0 0.0
    %108 = vmatprep.subr.mxu0 0.0
    %109 = vmatpush2.msra.mxu0 0.0
    %110 = vmatprep.subr.mxu0 0.0
    %111 = vmatpush2.msra.mxu0 0.0
    %112 = vmatprep.subr.mxu0 0.0
    %113 = vmatpush2.msra.mxu0 0.0
    %114 = vmatprep.subr.mxu0 0.0
    %115 = vmatpush2.msra.mxu0 0.0
    %116 = vmatprep.subr.mxu0 0.0
    %117 = vmatpush2.msra.mxu0 0.0
    %118 = vmatprep.subr.mxu0 0.0
    %119 = vmatpush2.msra.mxu0 0.0
    %120 = vmatprep.subr.mxu0 0.0
    %121 = vmatpush2.msra.mxu0 0.0
    %122 = vmatprep.subr.mxu0 0.0
    %123 = vmatpush2.msra.mxu0 0.0
    %124 = vmatprep.subr.mxu0 0.0
    %125 = vmatpush2.msra.mxu0 0.0
    %126 = vmatprep.mubr.f32.mxu0 0.0
    %127 = vmatmul.mubr.f32.gmra.mxu0 %v45
    %v128 = vpop.f32.mrf.mxu0
    %v129 = vadd.f32 0.0, %v128
    %v130 = vpop.f32.mrf.mxu0
    %131 = vdwg.mxu0
    %v132 = vld [vmem:[#allocation2] sm:$0x1]
    %v133 = vrot.slane %v129, 4
    %v134 = vmax.f32 %v129, %v133
    %v135 = vrot.slane %v134, 2
    %v136 = vmax.f32 %v134, %v135
    %v137 = vrot.slane %v136, 1
    %v138 = vmax.f32 %v136, %v137
    %v139 = vmax.f32 %v132, %v138
    %v140 = vsub.f32 %v132, %v139
    %v141 = vmul.f32 %v140, 1.442695
    %v142 = vpow.pop %v141
    %v144 = vlaneseq
    %v145 = vshrl.u32 %v144, 7
    %v146 = vsub.s32 0, %v145
    %v147 = vrot.slane %v139, %v146
    %v149 = vsub.f32 %v129, %v147
    %v150 = vmul.f32 %v149, 1.442695
    %v151 = vpow.pop %v150
    %v152 = vld [vmem:[#allocation4] sm:$0x1]
    %v153 = vmul.f32 %v142, %v152
    %v154 = vrot.slane %v151, 4
    %v155 = vadd.f32 %v151, %v154
    %v156 = vrot.slane %v155, 2
    %v157 = vadd.f32 %v155, %v156
    %v158 = vrot.slane %v157, 1
    %v159 = vadd.f32 %v157, %v158
    %v160 = vadd.f32 %v153, %v159
    %161 = vst [vmem:[#allocation4] sm:$0x1] %v160
    %v162 = vld [vmem:[#allocation3] sm:$0x1]
    %v163 = vmul.f32 %v142, %v162
    %v164 = vmul.f32 %v45, %v151
    %v165 = vrot.slane %v164, 4
    %v166 = vadd.f32 %v164, %v165
    %v167 = vrot.slane %v166, 2
    %v168 = vadd.f32 %v166, %v167
    %v169 = vrot.slane %v168, 1
    %v170 = vadd.f32 %v168, %v169
    %v171 = vadd.f32 %v163, %v170
    %172 = vst [vmem:[#allocation3] sm:$0x1] %v171
    %173 = vst [vmem:[#allocation2] sm:$0x1] %v139
    // Predicated region
    $region22: #{tpu_custom_call.1} parent=1 // pred_check
      %p174 = pneg %p38
    $region23: #{tpu_custom_call.1} parent=1 // pred_check_branch
      %176 = sbr.rel (%p174) target = $region25
    $region24: #{tpu_custom_call.1} parent=1 // pred_region
      %v177 = vld [vmem:[#allocation3] sm:$0x1]
      %v178 = vld [vmem:[#allocation4] sm:$0x1]
      %v179 = vrcp.pop %v178
      %v180 = vmul.f32 %v177, %v179
      %181 = vst [vmem:[#allocation10] sm:$0x1] %v180
    $region25: #{tpu_custom_call.1} parent=1 // pred_fallthru
      _
    // Predicated region
    $region26: #{tpu_custom_call.1} parent=1 // pred_check
      _
    $region27: #{tpu_custom_call.1} parent=1 // pred_check_branch
      %183 = sbr.rel (0) target = $region29
    $region28: #{tpu_custom_call.1} parent=1 // pred_region
      %s185 = ssub.s32 16, 16
      %186 = vsyncadd [#allocation7], %s185
      %s188 = sshll.u32 [#allocation10], 4
      %s189 = int_to_ptr.vmem [resolvable:$true] %s188
      %191 = dma.vmem_to_hbm [thread:$0]  %s189, 16, %s2, [#allocation7]
    $region29: #{tpu_custom_call.1} parent=1 // pred_fallthru
      _
    // Predicated region
    $region30: #{tpu_custom_call.1} parent=1 // pred_check
      _
    $region31: #{tpu_custom_call.1} parent=1 // pred_check_branch
      %193 = sbr.rel (0) target = $region33
    $region32: #{tpu_custom_call.1} parent=1 // pred_region
      %194 = dma.done [#allocation7], 16
    $region33: #{tpu_custom_call.1} parent=1 // pred_fallthru
      _
    %195 = vsyncpa [#allocation6], 1
    %196 = vsyncpa [#allocation9], 1
    %197 = vsyncpa [#allocation7], 1

</llo_original>
